<compile_context>
chip_gen: v7x
topology: tpu7x:2x2x1
jax: 0.10.0
libtpu: 0.0.40
codegen_flags: <defaults>
</compile_context>

<pallas_src>
import functools

import jax
import jax.numpy as jnp
from jax.experimental import pallas as pl
from jax.experimental.pallas import tpu as pltpu


_LANES = 128
_SINGLE_TILE_ROWS = 256             # <= this many rows -> one block, grid=(1,)
_X_TILE_BUDGET_BYTES = 10 * 2 ** 20  # double-buffered x blocks; fits v5e's
                                     # 16 MiB scoped-VMEM default with headroom
_VMEM_LIMIT_BYTES = 32 * 2 ** 20     # explicit scoped-VMEM ceiling; safe on
                                     # v5e/v6e (128 MiB phys) and v7x (64 MiB)


def _round_up(x, m):
    return ((x + m - 1) // m) * m


def _linear_head_kernel(x_ref, wt_ref, b_ref, o_ref):
    """o = (x @ wt + b)[:, :n_out] for one M tile.

    x_ref : (TM, K)      activations (caller dtype; f32 or bf16)
    wt_ref: (K, N_pad)   pre-transposed head weight, lane-padded to 128
    b_ref : (1, N_pad)   f32 bias, lane-padded
    o_ref : (TM, n_out)  exact-width logits block (no 128-lane HBM padding)
    """
    x = x_ref[...]
    w = wt_ref[...]
    if x.dtype != w.dtype:
        # Opt-in bf16 MXU-operand path: cast the tile in-kernel (no extra HBM
        # pass in the wrapper); accumulation and bias add stay f32.
        x = x.astype(w.dtype)
    acc = jnp.dot(x, w, preferred_element_type=jnp.float32) + b_ref[...]
    n_out = o_ref.shape[1]
    o_ref[...] = acc[:, :n_out].astype(o_ref.dtype)


def _pick_tile_m(m_rows, k, x_isz, n_out, o_isz):
    """16-row-aligned M tile, sized for a v5e-safe VMEM budget, >=2 tiles when big."""
    if m_rows <= _SINGLE_TILE_ROWS:
        return _round_up(max(m_rows, 16), 16)   # single (ragged-edge ok) block
    tile = 128
    for cand in (4096, 2048, 1024, 512, 256, 128):
        need = 2 * cand * (k * x_isz + n_out * o_isz) + cand * _LANES * 4
        if need <= _X_TILE_BUDGET_BYTES:
            tile = cand
            break
    if tile * 2 > m_rows:
        # Guarantee >= 2 tiles so v7x's two TensorCores both get work.
        tile = max(16, _round_up(pl.cdiv(m_rows, 2), 16))
    return tile


def _project_head(x2d, wt_pad, b_pad, n_out, out_dtype):
    """Row-wise linear head: y = x2d @ wt_pad[:, :n_out] + b, M-tiled pallas_call."""
    m_rows, k = x2d.shape
    n_pad = wt_pad.shape[1]
    x_isz = x2d.dtype.itemsize
    o_isz = jnp.dtype(out_dtype).itemsize

    tile_m = _pick_tile_m(m_rows, k, x_isz, n_out, o_isz)
    num_tiles = pl.cdiv(m_rows, tile_m)

    cost = pl.CostEstimate(
        flops=2 * m_rows * k * n_pad,
        transcendentals=0,
        bytes_accessed=(m_rows * k * x_isz
                        + k * n_pad * wt_pad.dtype.itemsize
                        + n_pad * 4
                        + m_rows * n_out * o_isz),
    )

    return pl.pallas_call(
        _linear_head_kernel,
        out_shape=jax.ShapeDtypeStruct((m_rows, n_out), out_dtype),
        grid=(num_tiles,),
        in_specs=[
            pl.BlockSpec((tile_m, k), lambda i: (i, 0)),
            pl.BlockSpec((k, n_pad), lambda i: (0, 0)),   # weight stays VMEM-resident
            pl.BlockSpec((1, n_pad), lambda i: (0, 0)),   # bias   stays VMEM-resident
        ],
        out_specs=pl.BlockSpec((tile_m, n_out), lambda i: (i, 0)),
        compiler_params=pltpu.CompilerParams(
            dimension_semantics=("parallel",),            # v7x: shard M over 2 TCs
            vmem_limit_bytes=_VMEM_LIMIT_BYTES),
        cost_estimate=cost,
    )(x2d, wt_pad, b_pad)


@functools.partial(jax.jit, static_argnames=("n_lin", "n_rem", "out_dtype"))
def _decoder_forward(wt_lin, b_lin, wt_rem, b_rem, h_layers, h_remedy,
                     *, n_lin, n_rem, out_dtype):
    k = wt_lin.shape[0]
    # Each layer is read straight from the caller's array (reshape is free):
    # no concat, no activation padding, no post-hoc slicing.
    logits = [
        _project_head(h.reshape(-1, k), wt_lin, b_lin, n_lin, out_dtype)
        .reshape(*h.shape[:-1], n_lin)
        for h in h_layers
    ]
    remedy_logits = None
    if h_remedy is not None:
        remedy_logits = _project_head(
            h_remedy.reshape(-1, k), wt_rem, b_rem, n_rem, out_dtype
        ).reshape(*h_remedy.shape[:-1], n_rem)
    return logits, remedy_logits


class LinearDecoderPallas:
    """JAX/Pallas port of pyramid_nested_ner LinearDecoder."""

    def __init__(self, input_size, classes, key, use_bf16=False,
                 out_dtype=jnp.float32):
        self.input_size = input_size
        self.classes = classes
        self.remedy_out = (classes - 1) * 2
        self.out_dtype = out_dtype

        k1, k2, k3, k4 = jax.random.split(key, 4)
        bound = 1.0 / float(input_size) ** 0.5
        # linear_decoder: nn.Linear(input_size, classes)
        self.w_lin = jax.random.uniform(
            k1, (classes, input_size), jnp.float32, -bound, bound)
        self.b_lin = jax.random.uniform(
            k2, (classes,), jnp.float32, -bound, bound)
        # remedy_decoder: nn.Linear(input_size, (classes - 1) * 2)
        self.w_rem = jax.random.uniform(
            k3, (self.remedy_out, input_size), jnp.float32, -bound, bound)
        self.b_rem = jax.random.uniform(
            k4, (self.remedy_out,), jnp.float32, -bound, bound)

        # Pre-transposed, lane-padded per-head parameters, built ONCE in
        # __init__ (no per-call .T / .astype / padding passes).
        w_dtype = jnp.bfloat16 if use_bf16 else jnp.float32
        self.wt_lin = self._pad_head(self.w_lin).astype(w_dtype)   # (K, 128*)
        self.wt_rem = self._pad_head(self.w_rem).astype(w_dtype)
        self.b2_lin = self._pad_bias(self.b_lin)                   # (1, 128*) f32
        self.b2_rem = self._pad_bias(self.b_rem)

    def _pad_head(self, w):
        n, k = w.shape
        n_pad = max(_LANES, _round_up(n, _LANES))
        wt = jnp.zeros((k, n_pad), jnp.float32)
        return wt.at[:, :n].set(w.T)

    def _pad_bias(self, b):
        n = b.shape[0]
        n_pad = max(_LANES, _round_up(n, _LANES))
        b2 = jnp.zeros((1, n_pad), jnp.float32)
        return b2.at[0, :n].set(b)

    def __call__(self, h_layers, h_remedy=None):
        # TODO(synk): torch `.to(device)` has no Pallas analogue; arrays live
        # on JAX's default TPU backend.
        return _decoder_forward(
            self.wt_lin, self.b2_lin, self.wt_rem, self.b2_rem,
            tuple(h_layers), h_remedy,
            n_lin=self.classes, n_rem=self.remedy_out, out_dtype=self.out_dtype)


if __name__ == "__main__":
    key = jax.random.PRNGKey(0)
    k_params, k_h0, k_h1, k_h2, k_rem = jax.random.split(key, 5)

    batch, seq, hidden, classes = 2, 8, 32, 5
    decoder = LinearDecoderPallas(hidden, classes, k_params)

    # h_layers is a list of hidden states (pyramid layers have shrinking seq).
    h_layers = [
        jax.random.normal(k_h0, (batch, seq, hidden), jnp.float32),
        jax.random.normal(k_h1, (batch, seq - 1, hidden), jnp.float32),
        jax.random.normal(k_h2, (batch, seq - 2, hidden), jnp.float32),
    ]
    h_remedy = jax.random.normal(k_rem, (batch, seq, hidden), jnp.float32)

    logits, remedy_logits = decoder(h_layers, h_remedy)
    logits = [jax.block_until_ready(l) for l in logits]
    remedy_logits = jax.block_until_ready(remedy_logits)

    # f32 path: exact match against plain-JAX reference.
    for h, l in zip(h_layers, logits):
        ref = h @ decoder.w_lin.T + decoder.b_lin
        assert l.shape == (batch, h.shape[1], classes)
        assert jnp.allclose(l, ref, atol=1e-5), "linear decoder mismatch"
    ref_rem = h_remedy @ decoder.w_rem.T + decoder.b_rem
    assert remedy_logits.shape == (batch, seq, (classes - 1) * 2)
    assert jnp.allclose(remedy_logits, ref_rem, atol=1e-5), "remedy mismatch"

    # no-remedy path (matches torch forward(h_layers)).
    logits_only, none_out = decoder(h_layers, None)
    logits_only = [jax.block_until_ready(l) for l in logits_only]
    assert none_out is None
    for h, l in zip(h_layers, logits_only):
        ref = h @ decoder.w_lin.T + decoder.b_lin
        assert jnp.allclose(l, ref, atol=1e-5), "no-remedy path mismatch"

    # multi-tile path (M > 256): exercises >=2 parallel M tiles + boundary block.
    h_big = jax.random.normal(k_h0, (4, 70, hidden), jnp.float32)   # 280 rows
    (big_logits,), _ = decoder([h_big], None)
    big_logits = jax.block_until_ready(big_logits)
    ref_big = h_big @ decoder.w_lin.T + decoder.b_lin
    assert big_logits.shape == (4, 70, classes)
    assert jnp.allclose(big_logits, ref_big, atol=1e-5), "tiled path mismatch"

    # Opt-in bf16 MXU-operand / bf16-output path (v6e/v7x throughput; f32 acc).
    dec_bf16 = LinearDecoderPallas(hidden, classes, k_params,
                                   use_bf16=True, out_dtype=jnp.bfloat16)
    lb, rb = dec_bf16(h_layers, h_remedy)
    lb = [jax.block_until_ready(l) for l in lb]
    rb = jax.block_until_ready(rb)
    for h, l in zip(h_layers, lb):
        ref = h @ decoder.w_lin.T + decoder.b_lin
        assert l.shape == ref.shape and l.dtype == jnp.bfloat16
        assert jnp.allclose(l.astype(jnp.float32), ref, atol=1e-1), "bf16 mismatch"
    assert rb.shape == (batch, seq, (classes - 1) * 2)

    print("KERNEL_OK")
</pallas_src>

<mosaic_0001>
module attributes {stable_mosaic.version = 11 : i64} {
  func.func @_linear_head_kernel(%arg0: i32, %arg1: memref<16x32xf32, #tpu.memory_space<vmem>>, %arg2: memref<32x128xf32, #tpu.memory_space<vmem>>, %arg3: memref<1x128xf32, #tpu.memory_space<vmem>>, %arg4: memref<16x5xf32, #tpu.memory_space<vmem>>) attributes {dimension_semantics = [#tpu.dimension_semantics<parallel>], iteration_bounds = array<i64: 1>, scalar_prefetch = 0 : i64, scratch_operands = 0 : i64, tpu.core_type = #tpu.core_type<tc>, window_params = [{transform_indices = @transform_0, window_bounds = array<i64: 16, 32>}, {pipeline_mode = #tpu.pipeline_mode<synchronous>, transform_indices = @transform_1, window_bounds = array<i64: 32, 128>}, {pipeline_mode = #tpu.pipeline_mode<synchronous>, transform_indices = @transform_2, window_bounds = array<i64: 1, 128>}, {transform_indices = @transform_3, window_bounds = array<i64: 16, 5>}]} {
    %c0 = arith.constant 0 : index
    %c0_0 = arith.constant 0 : index
    %0 = vector.load %arg1[%c0, %c0_0] : memref<16x32xf32, #tpu.memory_space<vmem>>, vector<16x32xf32>
    %c0_1 = arith.constant 0 : index
    %c0_2 = arith.constant 0 : index
    %1 = vector.load %arg2[%c0_1, %c0_2] : memref<32x128xf32, #tpu.memory_space<vmem>>, vector<32x128xf32>
    %cst = arith.constant dense<0.000000e+00> : vector<16x128xf32>
    %2 = tpu.matmul %0, %1, %cst {dimension_numbers = #tpu.dot_dimension_numbers<[1], [0], [0], [1], [0, 0, 1, 1], [], []>} : vector<16x32xf32>, vector<32x128xf32>, vector<16x128xf32> -> vector<16x128xf32>
    %c0_3 = arith.constant 0 : index
    %c0_4 = arith.constant 0 : index
    %3 = vector.load %arg3[%c0_3, %c0_4] : memref<1x128xf32, #tpu.memory_space<vmem>>, vector<1x128xf32>
    %4 = vector.broadcast %3 : vector<1x128xf32> to vector<16x128xf32>
    %5 = arith.addf %2, %4 : vector<16x128xf32>
    %6 = vector.extract_strided_slice %5 {offsets = [0, 0], sizes = [16, 5], strides = [1, 1]} : vector<16x128xf32> to vector<16x5xf32>
    %c0_5 = arith.constant 0 : index
    %c0_6 = arith.constant 0 : index
    %7 = vector.load %arg4[%c0_5, %c0_6] : memref<16x5xf32, #tpu.memory_space<vmem>>, vector<16x5xf32>
    tpu.vector_store %arg4[%c0_5, %c0_6], %6 {strides = array<i32>} : memref<16x5xf32, #tpu.memory_space<vmem>>, vector<16x5xf32>,
    return
  }
  func.func @transform_0(%arg0: i32) -> (i32, i32) {
    %c0_i32 = arith.constant 0 : i32
    %c0_i32_0 = arith.constant 0 : i32
    return %arg0, %c0_i32 : i32, i32
  }
  func.func @transform_1(%arg0: i32) -> (i32, i32) {
    %c0_i32 = arith.constant 0 : i32
    %c0_i32_0 = arith.constant 0 : i32
    %c0_i32_1 = arith.constant 0 : i32
    return %c0_i32, %c0_i32_0 : i32, i32
  }
  func.func @transform_2(%arg0: i32) -> (i32, i32) {
    %c0_i32 = arith.constant 0 : i32
    %c0_i32_0 = arith.constant 0 : i32
    %c0_i32_1 = arith.constant 0 : i32
    return %c0_i32, %c0_i32_0 : i32, i32
  }
  func.func @transform_3(%arg0: i32) -> (i32, i32) {
    %c0_i32 = arith.constant 0 : i32
    %c0_i32_0 = arith.constant 0 : i32
    return %arg0, %c0_i32 : i32, i32
  }
}

module attributes {stable_mosaic.version = 11 : i64} {
  func.func @_linear_head_kernel(%arg0: i32, %arg1: memref<16x32xf32, #tpu.memory_space<vmem>>, %arg2: memref<32x128xf32, #tpu.memory_space<vmem>>, %arg3: memref<1x128xf32, #tpu.memory_space<vmem>>, %arg4: memref<16x5xf32, #tpu.memory_space<vmem>>) attributes {dimension_semantics = [#tpu.dimension_semantics<parallel>], iteration_bounds = array<i64: 1>, scalar_prefetch = 0 : i64, scratch_operands = 0 : i64, tpu.core_type = #tpu.core_type<tc>, window_params = [{transform_indices = @transform_0, window_bounds = array<i64: 16, 32>}, {pipeline_mode = #tpu.pipeline_mode<synchronous>, transform_indices = @transform_1, window_bounds = array<i64: 32, 128>}, {pipeline_mode = #tpu.pipeline_mode<synchronous>, transform_indices = @transform_2, window_bounds = array<i64: 1, 128>}, {transform_indices = @transform_3, window_bounds = array<i64: 16, 5>}]} {
    %c0 = arith.constant 0 : index
    %c0_0 = arith.constant 0 : index
    %0 = vector.load %arg1[%c0, %c0_0] : memref<16x32xf32, #tpu.memory_space<vmem>>, vector<16x32xf32>
    %c0_1 = arith.constant 0 : index
    %c0_2 = arith.constant 0 : index
    %1 = vector.load %arg2[%c0_1, %c0_2] : memref<32x128xf32, #tpu.memory_space<vmem>>, vector<32x128xf32>
    %cst = arith.constant dense<0.000000e+00> : vector<16x128xf32>
    %2 = tpu.matmul %0, %1, %cst {dimension_numbers = #tpu.dot_dimension_numbers<[1], [0], [0], [1], [0, 0, 1, 1], [], []>} : vector<16x32xf32>, vector<32x128xf32>, vector<16x128xf32> -> vector<16x128xf32>
    %c0_3 = arith.constant 0 : index
    %c0_4 = arith.constant 0 : index
    %3 = vector.load %arg3[%c0_3, %c0_4] : memref<1x128xf32, #tpu.memory_space<vmem>>, vector<1x128xf32>
    %4 = vector.broadcast %3 : vector<1x128xf32> to vector<16x128xf32>
    %5 = arith.addf %2, %4 : vector<16x128xf32>
    %6 = vector.extract_strided_slice %5 {offsets = [0, 0], sizes = [16, 5], strides = [1, 1]} : vector<16x128xf32> to vector<16x5xf32>
    %c0_5 = arith.constant 0 : index
    %c0_6 = arith.constant 0 : index
    %7 = vector.load %arg4[%c0_5, %c0_6] : memref<16x5xf32, #tpu.memory_space<vmem>>, vector<16x5xf32>
    tpu.vector_store %arg4[%c0_5, %c0_6], %6 {strides = array<i32>} : memref<16x5xf32, #tpu.memory_space<vmem>>, vector<16x5xf32>,
    return
  }
  func.func @transform_0(%arg0: i32) -> (i32, i32) {
    %c0_i32 = arith.constant 0 : i32
    %c0_i32_0 = arith.constant 0 : i32
    return %arg0, %c0_i32 : i32, i32
  }
  func.func @transform_1(%arg0: i32) -> (i32, i32) {
    %c0_i32 = arith.constant 0 : i32
    %c0_i32_0 = arith.constant 0 : i32
    %c0_i32_1 = arith.constant 0 : i32
    return %c0_i32, %c0_i32_0 : i32, i32
  }
  func.func @transform_2(%arg0: i32) -> (i32, i32) {
    %c0_i32 = arith.constant 0 : i32
    %c0_i32_0 = arith.constant 0 : i32
    %c0_i32_1 = arith.constant 0 : i32
    return %c0_i32, %c0_i32_0 : i32, i32
  }
  func.func @transform_3(%arg0: i32) -> (i32, i32) {
    %c0_i32 = arith.constant 0 : i32
    %c0_i32_0 = arith.constant 0 : i32
    return %arg0, %c0_i32 : i32, i32
  }
}

module attributes {stable_mosaic.version = 11 : i64} {
  func.func @_linear_head_kernel(%arg0: i32, %arg1: memref<16x32xf32, #tpu.memory_space<vmem>>, %arg2: memref<32x128xf32, #tpu.memory_space<vmem>>, %arg3: memref<1x128xf32, #tpu.memory_space<vmem>>, %arg4: memref<16x5xf32, #tpu.memory_space<vmem>>) attributes {dimension_semantics = [#tpu.dimension_semantics<parallel>], iteration_bounds = array<i64: 1>, scalar_prefetch = 0 : i64, scratch_operands = 0 : i64, tpu.core_type = #tpu.core_type<tc>, window_params = [{transform_indices = @transform_0, window_bounds = array<i64: 16, 32>}, {pipeline_mode = #tpu.pipeline_mode<synchronous>, transform_indices = @transform_1, window_bounds = array<i64: 32, 128>}, {pipeline_mode = #tpu.pipeline_mode<synchronous>, transform_indices = @transform_2, window_bounds = array<i64: 1, 128>}, {transform_indices = @transform_3, window_bounds = array<i64: 16, 5>}]} {
    %c0 = arith.constant 0 : index
    %c0_0 = arith.constant 0 : index
    %0 = vector.load %arg1[%c0, %c0_0] : memref<16x32xf32, #tpu.memory_space<vmem>>, vector<16x32xf32>
    %c0_1 = arith.constant 0 : index
    %c0_2 = arith.constant 0 : index
    %1 = vector.load %arg2[%c0_1, %c0_2] : memref<32x128xf32, #tpu.memory_space<vmem>>, vector<32x128xf32>
    %cst = arith.constant dense<0.000000e+00> : vector<16x128xf32>
    %2 = tpu.matmul %0, %1, %cst {dimension_numbers = #tpu.dot_dimension_numbers<[1], [0], [0], [1], [0, 0, 1, 1], [], []>} : vector<16x32xf32>, vector<32x128xf32>, vector<16x128xf32> -> vector<16x128xf32>
    %c0_3 = arith.constant 0 : index
    %c0_4 = arith.constant 0 : index
    %3 = vector.load %arg3[%c0_3, %c0_4] : memref<1x128xf32, #tpu.memory_space<vmem>>, vector<1x128xf32>
    %4 = vector.broadcast %3 : vector<1x128xf32> to vector<16x128xf32>
    %5 = arith.addf %2, %4 : vector<16x128xf32>
    %6 = vector.extract_strided_slice %5 {offsets = [0, 0], sizes = [16, 5], strides = [1, 1]} : vector<16x128xf32> to vector<16x5xf32>
    %c0_5 = arith.constant 0 : index
    %c0_6 = arith.constant 0 : index
    %7 = vector.load %arg4[%c0_5, %c0_6] : memref<16x5xf32, #tpu.memory_space<vmem>>, vector<16x5xf32>
    tpu.vector_store %arg4[%c0_5, %c0_6], %6 {strides = array<i32>} : memref<16x5xf32, #tpu.memory_space<vmem>>, vector<16x5xf32>,
    return
  }
  func.func @transform_0(%arg0: i32) -> (i32, i32) {
    %c0_i32 = arith.constant 0 : i32
    %c0_i32_0 = arith.constant 0 : i32
    return %arg0, %c0_i32 : i32, i32
  }
  func.func @transform_1(%arg0: i32) -> (i32, i32) {
    %c0_i32 = arith.constant 0 : i32
    %c0_i32_0 = arith.constant 0 : i32
    %c0_i32_1 = arith.constant 0 : i32
    return %c0_i32, %c0_i32_0 : i32, i32
  }
  func.func @transform_2(%arg0: i32) -> (i32, i32) {
    %c0_i32 = arith.constant 0 : i32
    %c0_i32_0 = arith.constant 0 : i32
    %c0_i32_1 = arith.constant 0 : i32
    return %c0_i32, %c0_i32_0 : i32, i32
  }
  func.func @transform_3(%arg0: i32) -> (i32, i32) {
    %c0_i32 = arith.constant 0 : i32
    %c0_i32_0 = arith.constant 0 : i32
    return %arg0, %c0_i32 : i32, i32
  }
}

module attributes {stable_mosaic.version = 11 : i64} {
  func.func @_linear_head_kernel(%arg0: i32, %arg1: memref<16x32xf32, #tpu.memory_space<vmem>>, %arg2: memref<32x128xf32, #tpu.memory_space<vmem>>, %arg3: memref<1x128xf32, #tpu.memory_space<vmem>>, %arg4: memref<16x8xf32, #tpu.memory_space<vmem>>) attributes {dimension_semantics = [#tpu.dimension_semantics<parallel>], iteration_bounds = array<i64: 1>, scalar_prefetch = 0 : i64, scratch_operands = 0 : i64, tpu.core_type = #tpu.core_type<tc>, window_params = [{transform_indices = @transform_0, window_bounds = array<i64: 16, 32>}, {pipeline_mode = #tpu.pipeline_mode<synchronous>, transform_indices = @transform_1, window_bounds = array<i64: 32, 128>}, {pipeline_mode = #tpu.pipeline_mode<synchronous>, transform_indices = @transform_2, window_bounds = array<i64: 1, 128>}, {transform_indices = @transform_3, window_bounds = array<i64: 16, 8>}]} {
    %c0 = arith.constant 0 : index
    %c0_0 = arith.constant 0 : index
    %0 = vector.load %arg1[%c0, %c0_0] : memref<16x32xf32, #tpu.memory_space<vmem>>, vector<16x32xf32>
    %c0_1 = arith.constant 0 : index
    %c0_2 = arith.constant 0 : index
    %1 = vector.load %arg2[%c0_1, %c0_2] : memref<32x128xf32, #tpu.memory_space<vmem>>, vector<32x128xf32>
    %cst = arith.constant dense<0.000000e+00> : vector<16x128xf32>
    %2 = tpu.matmul %0, %1, %cst {dimension_numbers = #tpu.dot_dimension_numbers<[1], [0], [0], [1], [0, 0, 1, 1], [], []>} : vector<16x32xf32>, vector<32x128xf32>, vector<16x128xf32> -> vector<16x128xf32>
    %c0_3 = arith.constant 0 : index
    %c0_4 = arith.constant 0 : index
    %3 = vector.load %arg3[%c0_3, %c0_4] : memref<1x128xf32, #tpu.memory_space<vmem>>, vector<1x128xf32>
    %4 = vector.broadcast %3 : vector<1x128xf32> to vector<16x128xf32>
    %5 = arith.addf %2, %4 : vector<16x128xf32>
    %6 = vector.extract_strided_slice %5 {offsets = [0, 0], sizes = [16, 8], strides = [1, 1]} : vector<16x128xf32> to vector<16x8xf32>
    %c0_5 = arith.constant 0 : index
    %c0_6 = arith.constant 0 : index
    %7 = vector.load %arg4[%c0_5, %c0_6] : memref<16x8xf32, #tpu.memory_space<vmem>>, vector<16x8xf32>
    tpu.vector_store %arg4[%c0_5, %c0_6], %6 {strides = array<i32>} : memref<16x8xf32, #tpu.memory_space<vmem>>, vector<16x8xf32>,
    return
  }
  func.func @transform_0(%arg0: i32) -> (i32, i32) {
    %c0_i32 = arith.constant 0 : i32
    %c0_i32_0 = arith.constant 0 : i32
    return %arg0, %c0_i32 : i32, i32
  }
  func.func @transform_1(%arg0: i32) -> (i32, i32) {
    %c0_i32 = arith.constant 0 : i32
    %c0_i32_0 = arith.constant 0 : i32
    %c0_i32_1 = arith.constant 0 : i32
    return %c0_i32, %c0_i32_0 : i32, i32
  }
  func.func @transform_2(%arg0: i32) -> (i32, i32) {
    %c0_i32 = arith.constant 0 : i32
    %c0_i32_0 = arith.constant 0 : i32
    %c0_i32_1 = arith.constant 0 : i32
    return %c0_i32, %c0_i32_0 : i32, i32
  }
  func.func @transform_3(%arg0: i32) -> (i32, i32) {
    %c0_i32 = arith.constant 0 : i32
    %c0_i32_0 = arith.constant 0 : i32
    return %arg0, %c0_i32 : i32, i32
  }
}

</mosaic_0001>

<llo_original>
// kernel: _decoder_forward.5
$region0: #{_decoder_forward.5}
  #allocation0 [shape = 'u32[]', space=smem, size = 0x4, offset = 0x4, fixed_abs, tag = 'smem constant byte address 0x4 - core index']
  #allocation1 [shape = 'u32[144,128]{1,0:T(1,128)}', space=vmem, size = 0x12000, scoped, tag = 'internal scratch']
  %s0 = inlined_call_operand.vmem [shape: f32[14,32], index: 0, kind: input, shape index: {}]
  %s1 = inlined_call_operand.vmem [shape: f32[32,128], index: 1, kind: input, shape index: {}]
  %s2 = inlined_call_operand.vmem [shape: f32[1,128], index: 2, kind: input, shape index: {}]
  %s3 = inlined_call_operand.vmem [shape: f32[14,5], index: 3, kind: output, shape index: {}]
  %s4 = sld [smem:[#allocation0]]
  $region22: #{_decoder_forward.5} parent=0
    _
  %s6 = ssub.s32 1, %s4
  %s7 = scalar_select 0, %s6, %s4
  // Predicated region
  $region2: #{_decoder_forward.5} parent=0 // pred_check
    _
  $region3: #{_decoder_forward.5} parent=0 // pred_check_branch
    %9 = sbr.rel (0) target = $region5
  $region4: #{_decoder_forward.5} parent=0 // pred_region
    _
  $region5: #{_decoder_forward.5} parent=0 // pred_fallthru
    _
  // Predicated region
  $region6: #{_decoder_forward.5} parent=0 // pred_check
    _
  $region7: #{_decoder_forward.5} parent=0 // pred_check_branch
    %11 = sbr.rel (0) target = $region9
  $region8: #{_decoder_forward.5} parent=0 // pred_region
    _
  $region9: #{_decoder_forward.5} parent=0 // pred_fallthru
    _
  // Predicated region
  $region10: #{_decoder_forward.5} parent=0 // pred_check
    _
  $region11: #{_decoder_forward.5} parent=0 // pred_check_branch
    %13 = sbr.rel (0) target = $region13
  $region12: #{_decoder_forward.5} parent=0 // pred_region
    _
  $region13: #{_decoder_forward.5} parent=0 // pred_fallthru
    _
  %v14 = vld [vmem:[%s0] sm:$0xff]
  %v15 = vld [vmem:[%s0 + $0x8] sm:$0xff]
  %v16 = vld [vmem:[%s1] sm:$0xff]
  %v17 = vld [vmem:[%s1 + $0x8] sm:$0xff]
  %v18 = vld [vmem:[%s1 + $0x10] sm:$0xff]
  %v19 = vld [vmem:[%s1 + $0x18] sm:$0xff]
  %v20 = vld [vmem:[%s2] sm:$0x1]
  %v22 = vlaneseq
  %v23 = vshrl.u32 %v22, 7
  %v24 = vsub.s32 0, %v23
  %v25 = vrot.slane %v20, %v24
  %vm27 = vcmask 261120
  %v29 = vsel %vm27, %v14, 0
  %v32 = vsel %vm27, %v15, 0
  %34 = vmatprep.subr.mxu0 0.0
  %35 = vmatpush1.msra.mxu0 %v16
  %36 = vmatprep.subr.mxu0 0.0
  %37 = vmatpush1.msra.mxu0 %v17
  %38 = vmatprep.subr.mxu0 0.0
  %39 = vmatpush1.msra.mxu0 %v18
  %40 = vmatprep.subr.mxu0 0.0
  %41 = vmatpush1.msra.mxu0 %v19
  %42 = vmatprep.subr.mxu0 0.0
  %43 = vmatpush1.msra.mxu0 0.0
  %44 = vmatprep.subr.mxu0 0.0
  %45 = vmatpush1.msra.mxu0 0.0
  %46 = vmatprep.subr.mxu0 0.0
  %47 = vmatpush1.msra.mxu0 0.0
  %48 = vmatprep.subr.mxu0 0.0
  %49 = vmatpush1.msra.mxu0 0.0
  %50 = vmatprep.subr.mxu0 0.0
  %51 = vmatpush1.msra.mxu0 0.0
  %52 = vmatprep.subr.mxu0 0.0
  %53 = vmatpush1.msra.mxu0 0.0
  %54 = vmatprep.subr.mxu0 0.0
  %55 = vmatpush1.msra.mxu0 0.0
  %56 = vmatprep.subr.mxu0 0.0
  %57 = vmatpush1.msra.mxu0 0.0
  %58 = vmatprep.subr.mxu0 0.0
  %59 = vmatpush1.msra.mxu0 0.0
  %60 = vmatprep.subr.mxu0 0.0
  %61 = vmatpush1.msra.mxu0 0.0
  %62 = vmatprep.subr.mxu0 0.0
  %63 = vmatpush1.msra.mxu0 0.0
  %64 = vmatprep.subr.mxu0 0.0
  %65 = vmatpush1.msra.mxu0 0.0
  %66 = vmatprep.subr.mxu0 0.0
  %67 = vmatpush1.msra.mxu0 0.0
  %68 = vmatprep.subr.mxu0 0.0
  %69 = vmatpush1.msra.mxu0 0.0
  %70 = vmatprep.subr.mxu0 0.0
  %71 = vmatpush1.msra.mxu0 0.0
  %72 = vmatprep.subr.mxu0 0.0
  %73 = vmatpush1.msra.mxu0 0.0
  %74 = vmatprep.subr.mxu0 0.0
  %75 = vmatpush1.msra.mxu0 0.0
  %76 = vmatprep.subr.mxu0 0.0
  %77 = vmatpush1.msra.mxu0 0.0
  %78 = vmatprep.subr.mxu0 0.0
  %79 = vmatpush1.msra.mxu0 0.0
  %80 = vmatprep.subr.mxu0 0.0
  %81 = vmatpush1.msra.mxu0 0.0
  %82 = vmatprep.subr.mxu0 0.0
  %83 = vmatpush1.msra.mxu0 0.0
  %84 = vmatprep.subr.mxu0 0.0
  %85 = vmatpush1.msra.mxu0 0.0
  %86 = vmatprep.subr.mxu0 0.0
  %87 = vmatpush1.msra.mxu0 0.0
  %88 = vmatprep.subr.mxu0 0.0
  %89 = vmatpush1.msra.mxu0 0.0
  %90 = vmatprep.subr.mxu0 0.0
  %91 = vmatpush1.msra.mxu0 0.0
  %92 = vmatprep.subr.mxu0 0.0
  %93 = vmatpush1.msra.mxu0 0.0
  %94 = vmatprep.subr.mxu0 0.0
  %95 = vmatpush1.msra.mxu0 0.0
  %96 = vmatprep.subr.mxu0 0.0
  %97 = vmatpush1.msra.mxu0 0.0
  %98 = vmatprep.mubr.f32.mxu0 0.0
  %99 = vmatmul.mubr.f32.gmra.mrb[0].mxu0 %v29
  %v100 = vpop.f32.mrb[0].mxu0
  %v101 = vadd.f32 %v25, %v100
  %v102 = vpop.f32.mrb[0].mxu0
  %103 = vmatprep.mubr.f32.mxu0 0.0
  %104 = vmatmul.mubr.f32.gmra.mrb[0].mxu0 %v32
  %v105 = vpop.f32.mrb[0].mxu0
  %v106 = vadd.f32 %v25, %v105
  %v107 = vpop.f32.mrb[0].mxu0
  %108 = vdwg.mxu0
  %vm109 = vcmask 39936
  %110 = vst.msk [vmem:[%s3] sm:$0xff] %vm109, %v101
  %111 = vst.msk [vmem:[%s3 + $0x8] sm:$0xff] %vm109, %v106
  // Predicated region
  $region14: #{_decoder_forward.5} parent=0 // pred_check
    _
  $region15: #{_decoder_forward.5} parent=0 // pred_check_branch
    %113 = sbr.rel (0) target = $region17
  $region16: #{_decoder_forward.5} parent=0 // pred_region
    _
  $region17: #{_decoder_forward.5} parent=0 // pred_fallthru
    _
  // Predicated region
  $region18: #{_decoder_forward.5} parent=0 // pred_check
    _
  $region19: #{_decoder_forward.5} parent=0 // pred_check_branch
    %115 = sbr.rel (0) target = $region21
  $region20: #{_decoder_forward.5} parent=0 // pred_region
    _
  $region21: #{_decoder_forward.5} parent=0 // pred_fallthru
    _

// kernel: _decoder_forward.6
$region0: #{_decoder_forward.6}
  #allocation0 [shape = 'u32[]', space=smem, size = 0x4, offset = 0x4, fixed_abs, tag = 'smem constant byte address 0x4 - core index']
  #allocation1 [shape = 'u32[144,128]{1,0:T(1,128)}', space=vmem, size = 0x12000, scoped, tag = 'internal scratch']
  %s0 = inlined_call_operand.vmem [shape: f32[12,32], index: 0, kind: input, shape index: {}]
  %s1 = inlined_call_operand.vmem [shape: f32[32,128], index: 1, kind: input, shape index: {}]
  %s2 = inlined_call_operand.vmem [shape: f32[1,128], index: 2, kind: input, shape index: {}]
  %s3 = inlined_call_operand.vmem [shape: f32[12,5], index: 3, kind: output, shape index: {}]
  %s4 = sld [smem:[#allocation0]]
  $region22: #{_decoder_forward.6} parent=0
    _
  %s6 = ssub.s32 1, %s4
  %s7 = scalar_select 0, %s6, %s4
  // Predicated region
  $region2: #{_decoder_forward.6} parent=0 // pred_check
    _
  $region3: #{_decoder_forward.6} parent=0 // pred_check_branch
    %9 = sbr.rel (0) target = $region5
  $region4: #{_decoder_forward.6} parent=0 // pred_region
    _
  $region5: #{_decoder_forward.6} parent=0 // pred_fallthru
    _
  // Predicated region
  $region6: #{_decoder_forward.6} parent=0 // pred_check
    _
  $region7: #{_decoder_forward.6} parent=0 // pred_check_branch
    %11 = sbr.rel (0) target = $region9
  $region8: #{_decoder_forward.6} parent=0 // pred_region
    _
  $region9: #{_decoder_forward.6} parent=0 // pred_fallthru
    _
  // Predicated region
  $region10: #{_decoder_forward.6} parent=0 // pred_check
    _
  $region11: #{_decoder_forward.6} parent=0 // pred_check_branch
    %13 = sbr.rel (0) target = $region13
  $region12: #{_decoder_forward.6} parent=0 // pred_region
    _
  $region13: #{_decoder_forward.6} parent=0 // pred_fallthru
    _
  %v14 = vld [vmem:[%s0] sm:$0xff]
  %v15 = vld [vmem:[%s0 + $0x8] sm:$0xff]
  %v16 = vld [vmem:[%s1] sm:$0xff]
  %v17 = vld [vmem:[%s1 + $0x8] sm:$0xff]
  %v18 = vld [vmem:[%s1 + $0x10] sm:$0xff]
  %v19 = vld [vmem:[%s1 + $0x18] sm:$0xff]
  %v20 = vld [vmem:[%s2] sm:$0x1]
  %v22 = vlaneseq
  %v23 = vshrl.u32 %v22, 7
  %v24 = vsub.s32 0, %v23
  %v25 = vrot.slane %v20, %v24
  %vm27 = vcmask 261120
  %v29 = vsel %vm27, %v14, 0
  %v32 = vsel %vm27, %v15, 0
  %34 = vmatprep.subr.mxu0 0.0
  %35 = vmatpush1.msra.mxu0 %v16
  %36 = vmatprep.subr.mxu0 0.0
  %37 = vmatpush1.msra.mxu0 %v17
  %38 = vmatprep.subr.mxu0 0.0
  %39 = vmatpush1.msra.mxu0 %v18
  %40 = vmatprep.subr.mxu0 0.0
  %41 = vmatpush1.msra.mxu0 %v19
  %42 = vmatprep.subr.mxu0 0.0
  %43 = vmatpush1.msra.mxu0 0.0
  %44 = vmatprep.subr.mxu0 0.0
  %45 = vmatpush1.msra.mxu0 0.0
  %46 = vmatprep.subr.mxu0 0.0
  %47 = vmatpush1.msra.mxu0 0.0
  %48 = vmatprep.subr.mxu0 0.0
  %49 = vmatpush1.msra.mxu0 0.0
  %50 = vmatprep.subr.mxu0 0.0
  %51 = vmatpush1.msra.mxu0 0.0
  %52 = vmatprep.subr.mxu0 0.0
  %53 = vmatpush1.msra.mxu0 0.0
  %54 = vmatprep.subr.mxu0 0.0
  %55 = vmatpush1.msra.mxu0 0.0
  %56 = vmatprep.subr.mxu0 0.0
  %57 = vmatpush1.msra.mxu0 0.0
  %58 = vmatprep.subr.mxu0 0.0
  %59 = vmatpush1.msra.mxu0 0.0
  %60 = vmatprep.subr.mxu0 0.0
  %61 = vmatpush1.msra.mxu0 0.0
  %62 = vmatprep.subr.mxu0 0.0
  %63 = vmatpush1.msra.mxu0 0.0
  %64 = vmatprep.subr.mxu0 0.0
  %65 = vmatpush1.msra.mxu0 0.0
  %66 = vmatprep.subr.mxu0 0.0
  %67 = vmatpush1.msra.mxu0 0.0
  %68 = vmatprep.subr.mxu0 0.0
  %69 = vmatpush1.msra.mxu0 0.0
  %70 = vmatprep.subr.mxu0 0.0
  %71 = vmatpush1.msra.mxu0 0.0
  %72 = vmatprep.subr.mxu0 0.0
  %73 = vmatpush1.msra.mxu0 0.0
  %74 = vmatprep.subr.mxu0 0.0
  %75 = vmatpush1.msra.mxu0 0.0
  %76 = vmatprep.subr.mxu0 0.0
  %77 = vmatpush1.msra.mxu0 0.0
  %78 = vmatprep.subr.mxu0 0.0
  %79 = vmatpush1.msra.mxu0 0.0
  %80 = vmatprep.subr.mxu0 0.0
  %81 = vmatpush1.msra.mxu0 0.0
  %82 = vmatprep.subr.mxu0 0.0
  %83 = vmatpush1.msra.mxu0 0.0
  %84 = vmatprep.subr.mxu0 0.0
  %85 = vmatpush1.msra.mxu0 0.0
  %86 = vmatprep.subr.mxu0 0.0
  %87 = vmatpush1.msra.mxu0 0.0
  %88 = vmatprep.subr.mxu0 0.0
  %89 = vmatpush1.msra.mxu0 0.0
  %90 = vmatprep.subr.mxu0 0.0
  %91 = vmatpush1.msra.mxu0 0.0
  %92 = vmatprep.subr.mxu0 0.0
  %93 = vmatpush1.msra.mxu0 0.0
  %94 = vmatprep.subr.mxu0 0.0
  %95 = vmatpush1.msra.mxu0 0.0
  %96 = vmatprep.subr.mxu0 0.0
  %97 = vmatpush1.msra.mxu0 0.0
  %98 = vmatprep.mubr.f32.mxu0 0.0
  %99 = vmatmul.mubr.f32.gmra.mrb[0].mxu0 %v29
  %v100 = vpop.f32.mrb[0].mxu0
  %v101 = vadd.f32 %v25, %v100
  %v102 = vpop.f32.mrb[0].mxu0
  %103 = vmatprep.mubr.f32.mxu0 0.0
  %104 = vmatmul.mubr.f32.gmra.mrb[0].mxu0 %v32
  %v105 = vpop.f32.mrb[0].mxu0
  %v106 = vadd.f32 %v25, %v105
  %v107 = vpop.f32.mrb[0].mxu0
  %108 = vdwg.mxu0
  %vm109 = vcmask 39936
  %110 = vst.msk [vmem:[%s3] sm:$0xff] %vm109, %v101
  %111 = vst.msk [vmem:[%s3 + $0x8] sm:$0xff] %vm109, %v106
  // Predicated region
  $region14: #{_decoder_forward.6} parent=0 // pred_check
    _
  $region15: #{_decoder_forward.6} parent=0 // pred_check_branch
    %113 = sbr.rel (0) target = $region17
  $region16: #{_decoder_forward.6} parent=0 // pred_region
    _
  $region17: #{_decoder_forward.6} parent=0 // pred_fallthru
    _
  // Predicated region
  $region18: #{_decoder_forward.6} parent=0 // pred_check
    _
  $region19: #{_decoder_forward.6} parent=0 // pred_check_branch
    %115 = sbr.rel (0) target = $region21
  $region20: #{_decoder_forward.6} parent=0 // pred_region
    _
  $region21: #{_decoder_forward.6} parent=0 // pred_fallthru
    _

// kernel: _decoder_forward.4
$region0: #{_decoder_forward.4}
  #allocation0 [shape = 'u32[]', space=smem, size = 0x4, offset = 0x4, fixed_abs, tag = 'smem constant byte address 0x4 - core index']
  #allocation1 [shape = 'u32[144,128]{1,0:T(1,128)}', space=vmem, size = 0x12000, scoped, tag = 'internal scratch']
  %s0 = inlined_call_operand.vmem [shape: f32[16,32], index: 0, kind: input, shape index: {}]
  %s1 = inlined_call_operand.vmem [shape: f32[32,128], index: 1, kind: input, shape index: {}]
  %s2 = inlined_call_operand.vmem [shape: f32[1,128], index: 2, kind: input, shape index: {}]
  %s3 = inlined_call_operand.vmem [shape: f32[16,5], index: 3, kind: output, shape index: {}]
  %s4 = sld [smem:[#allocation0]]
  $region22: #{_decoder_forward.4} parent=0
    _
  %s6 = ssub.s32 1, %s4
  %s7 = scalar_select 0, %s6, %s4
  // Predicated region
  $region2: #{_decoder_forward.4} parent=0 // pred_check
    _
  $region3: #{_decoder_forward.4} parent=0 // pred_check_branch
    %9 = sbr.rel (0) target = $region5
  $region4: #{_decoder_forward.4} parent=0 // pred_region
    _
  $region5: #{_decoder_forward.4} parent=0 // pred_fallthru
    _
  // Predicated region
  $region6: #{_decoder_forward.4} parent=0 // pred_check
    _
  $region7: #{_decoder_forward.4} parent=0 // pred_check_branch
    %11 = sbr.rel (0) target = $region9
  $region8: #{_decoder_forward.4} parent=0 // pred_region
    _
  $region9: #{_decoder_forward.4} parent=0 // pred_fallthru
    _
  // Predicated region
  $region10: #{_decoder_forward.4} parent=0 // pred_check
    _
  $region11: #{_decoder_forward.4} parent=0 // pred_check_branch
    %13 = sbr.rel (0) target = $region13
  $region12: #{_decoder_forward.4} parent=0 // pred_region
    _
  $region13: #{_decoder_forward.4} parent=0 // pred_fallthru
    _
  %v14 = vld [vmem:[%s0] sm:$0xff]
  %v15 = vld [vmem:[%s0 + $0x8] sm:$0xff]
  %v16 = vld [vmem:[%s1] sm:$0xff]
  %v17 = vld [vmem:[%s1 + $0x8] sm:$0xff]
  %v18 = vld [vmem:[%s1 + $0x10] sm:$0xff]
  %v19 = vld [vmem:[%s1 + $0x18] sm:$0xff]
  %v20 = vld [vmem:[%s2] sm:$0x1]
  %v22 = vlaneseq
  %v23 = vshrl.u32 %v22, 7
  %v24 = vsub.s32 0, %v23
  %v25 = vrot.slane %v20, %v24
  %vm27 = vcmask 261120
  %v29 = vsel %vm27, %v14, 0
  %v32 = vsel %vm27, %v15, 0
  %34 = vmatprep.subr.mxu0 0.0
  %35 = vmatpush1.msra.mxu0 %v16
  %36 = vmatprep.subr.mxu0 0.0
  %37 = vmatpush1.msra.mxu0 %v17
  %38 = vmatprep.subr.mxu0 0.0
  %39 = vmatpush1.msra.mxu0 %v18
  %40 = vmatprep.subr.mxu0 0.0
  %41 = vmatpush1.msra.mxu0 %v19
  %42 = vmatprep.subr.mxu0 0.0
  %43 = vmatpush1.msra.mxu0 0.0
  %44 = vmatprep.subr.mxu0 0.0
  %45 = vmatpush1.msra.mxu0 0.0
  %46 = vmatprep.subr.mxu0 0.0
  %47 = vmatpush1.msra.mxu0 0.0
  %48 = vmatprep.subr.mxu0 0.0
  %49 = vmatpush1.msra.mxu0 0.0
  %50 = vmatprep.subr.mxu0 0.0
  %51 = vmatpush1.msra.mxu0 0.0
  %52 = vmatprep.subr.mxu0 0.0
  %53 = vmatpush1.msra.mxu0 0.0
  %54 = vmatprep.subr.mxu0 0.0
  %55 = vmatpush1.msra.mxu0 0.0
  %56 = vmatprep.subr.mxu0 0.0
  %57 = vmatpush1.msra.mxu0 0.0
  %58 = vmatprep.subr.mxu0 0.0
  %59 = vmatpush1.msra.mxu0 0.0
  %60 = vmatprep.subr.mxu0 0.0
  %61 = vmatpush1.msra.mxu0 0.0
  %62 = vmatprep.subr.mxu0 0.0
  %63 = vmatpush1.msra.mxu0 0.0
  %64 = vmatprep.subr.mxu0 0.0
  %65 = vmatpush1.msra.mxu0 0.0
  %66 = vmatprep.subr.mxu0 0.0
  %67 = vmatpush1.msra.mxu0 0.0
  %68 = vmatprep.subr.mxu0 0.0
  %69 = vmatpush1.msra.mxu0 0.0
  %70 = vmatprep.subr.mxu0 0.0
  %71 = vmatpush1.msra.mxu0 0.0
  %72 = vmatprep.subr.mxu0 0.0
  %73 = vmatpush1.msra.mxu0 0.0
  %74 = vmatprep.subr.mxu0 0.0
  %75 = vmatpush1.msra.mxu0 0.0
  %76 = vmatprep.subr.mxu0 0.0
  %77 = vmatpush1.msra.mxu0 0.0
  %78 = vmatprep.subr.mxu0 0.0
  %79 = vmatpush1.msra.mxu0 0.0
  %80 = vmatprep.subr.mxu0 0.0
  %81 = vmatpush1.msra.mxu0 0.0
  %82 = vmatprep.subr.mxu0 0.0
  %83 = vmatpush1.msra.mxu0 0.0
  %84 = vmatprep.subr.mxu0 0.0
  %85 = vmatpush1.msra.mxu0 0.0
  %86 = vmatprep.subr.mxu0 0.0
  %87 = vmatpush1.msra.mxu0 0.0
  %88 = vmatprep.subr.mxu0 0.0
  %89 = vmatpush1.msra.mxu0 0.0
  %90 = vmatprep.subr.mxu0 0.0
  %91 = vmatpush1.msra.mxu0 0.0
  %92 = vmatprep.subr.mxu0 0.0
  %93 = vmatpush1.msra.mxu0 0.0
  %94 = vmatprep.subr.mxu0 0.0
  %95 = vmatpush1.msra.mxu0 0.0
  %96 = vmatprep.subr.mxu0 0.0
  %97 = vmatpush1.msra.mxu0 0.0
  %98 = vmatprep.mubr.f32.mxu0 0.0
  %99 = vmatmul.mubr.f32.gmra.mrb[0].mxu0 %v29
  %v100 = vpop.f32.mrb[0].mxu0
  %v101 = vadd.f32 %v25, %v100
  %v102 = vpop.f32.mrb[0].mxu0
  %103 = vmatprep.mubr.f32.mxu0 0.0
  %104 = vmatmul.mubr.f32.gmra.mrb[0].mxu0 %v32
  %v105 = vpop.f32.mrb[0].mxu0
  %v106 = vadd.f32 %v25, %v105
  %v107 = vpop.f32.mrb[0].mxu0
  %108 = vdwg.mxu0
  %vm109 = vcmask 39936
  %110 = vst.msk [vmem:[%s3] sm:$0xff] %vm109, %v101
  %111 = vst.msk [vmem:[%s3 + $0x8] sm:$0xff] %vm109, %v106
  // Predicated region
  $region14: #{_decoder_forward.4} parent=0 // pred_check
    _
  $region15: #{_decoder_forward.4} parent=0 // pred_check_branch
    %113 = sbr.rel (0) target = $region17
  $region16: #{_decoder_forward.4} parent=0 // pred_region
    _
  $region17: #{_decoder_forward.4} parent=0 // pred_fallthru
    _
  // Predicated region
  $region18: #{_decoder_forward.4} parent=0 // pred_check
    _
  $region19: #{_decoder_forward.4} parent=0 // pred_check_branch
    %115 = sbr.rel (0) target = $region21
  $region20: #{_decoder_forward.4} parent=0 // pred_region
    _
  $region21: #{_decoder_forward.4} parent=0 // pred_fallthru
    _

// kernel: _decoder_forward.7
$region0: #{_decoder_forward.7}
  #allocation0 [shape = 'u32[]', space=smem, size = 0x4, offset = 0x4, fixed_abs, tag = 'smem constant byte address 0x4 - core index']
  #allocation1 [shape = 'u32[144,128]{1,0:T(1,128)}', space=vmem, size = 0x12000, scoped, tag = 'internal scratch']
  %s0 = inlined_call_operand.vmem [shape: f32[16,32], index: 0, kind: input, shape index: {}]
  %s1 = inlined_call_operand.vmem [shape: f32[32,128], index: 1, kind: input, shape index: {}]
  %s2 = inlined_call_operand.vmem [shape: f32[1,128], index: 2, kind: input, shape index: {}]
  %s3 = inlined_call_operand.hbm [shape: f32[16,8], index: 3, kind: output, shape index: {}]
  %s4 = sld [smem:[#allocation0]]
  $region22: #{_decoder_forward.7} parent=0
    _
  %s6 = ssub.s32 1, %s4
  %s7 = scalar_select 0, %s6, %s4
  $region1: #{_decoder_forward.7} parent=0
    #allocation2 [shape = 'u8[8192]{0}', space=vmem, size = 0x2000, scoped, tag = 'output window, operand 0, single buffered']
    #allocation3 [shape = 's32[1]{0}', space=sflag, size = 0x4, scoped, tag = 'scoped memory for _decoder_forward.7']
    %8 = vsyncpa [#allocation3], 0
    // Predicated region
    $region2: #{_decoder_forward.7} parent=1 // pred_check
      _
    $region3: #{_decoder_forward.7} parent=1 // pred_check_branch
      %10 = sbr.rel (0) target = $region5
    $region4: #{_decoder_forward.7} parent=1 // pred_region
      _
    $region5: #{_decoder_forward.7} parent=1 // pred_fallthru
      _
    // Predicated region
    $region6: #{_decoder_forward.7} parent=1 // pred_check
      _
    $region7: #{_decoder_forward.7} parent=1 // pred_check_branch
      %12 = sbr.rel (0) target = $region9
    $region8: #{_decoder_forward.7} parent=1 // pred_region
      _
    $region9: #{_decoder_forward.7} parent=1 // pred_fallthru
      _
    // Predicated region
    $region10: #{_decoder_forward.7} parent=1 // pred_check
      _
    $region11: #{_decoder_forward.7} parent=1 // pred_check_branch
      %14 = sbr.rel (0) target = $region13
    $region12: #{_decoder_forward.7} parent=1 // pred_region
      _
    $region13: #{_decoder_forward.7} parent=1 // pred_fallthru
      _
    %v15 = vld [vmem:[%s0] sm:$0xff]
    %v16 = vld [vmem:[%s0 + $0x8] sm:$0xff]
    %v17 = vld [vmem:[%s1] sm:$0xff]
    %v18 = vld [vmem:[%s1 + $0x8] sm:$0xff]
    %v19 = vld [vmem:[%s1 + $0x10] sm:$0xff]
    %v20 = vld [vmem:[%s1 + $0x18] sm:$0xff]
    %v21 = vld [vmem:[%s2] sm:$0x1]
    %v23 = vlaneseq
    %v24 = vshrl.u32 %v23, 7
    %v25 = vsub.s32 0, %v24
    %v26 = vrot.slane %v21, %v25
    %vm28 = vcmask 261120
    %v30 = vsel %vm28, %v15, 0
    %v33 = vsel %vm28, %v16, 0
    %35 = vmatprep.subr.mxu0 0.0
    %36 = vmatpush1.msra.mxu0 %v17
    %37 = vmatprep.subr.mxu0 0.0
    %38 = vmatpush1.msra.mxu0 %v18
    %39 = vmatprep.subr.mxu0 0.0
    %40 = vmatpush1.msra.mxu0 %v19
    %41 = vmatprep.subr.mxu0 0.0
    %42 = vmatpush1.msra.mxu0 %v20
    %43 = vmatprep.subr.mxu0 0.0
    %44 = vmatpush1.msra.mxu0 0.0
    %45 = vmatprep.subr.mxu0 0.0
    %46 = vmatpush1.msra.mxu0 0.0
    %47 = vmatprep.subr.mxu0 0.0
    %48 = vmatpush1.msra.mxu0 0.0
    %49 = vmatprep.subr.mxu0 0.0
    %50 = vmatpush1.msra.mxu0 0.0
    %51 = vmatprep.subr.mxu0 0.0
    %52 = vmatpush1.msra.mxu0 0.0
    %53 = vmatprep.subr.mxu0 0.0
    %54 = vmatpush1.msra.mxu0 0.0
    %55 = vmatprep.subr.mxu0 0.0
    %56 = vmatpush1.msra.mxu0 0.0
    %57 = vmatprep.subr.mxu0 0.0
    %58 = vmatpush1.msra.mxu0 0.0
    %59 = vmatprep.subr.mxu0 0.0
    %60 = vmatpush1.msra.mxu0 0.0
    %61 = vmatprep.subr.mxu0 0.0
    %62 = vmatpush1.msra.mxu0 0.0
    %63 = vmatprep.subr.mxu0 0.0
    %64 = vmatpush1.msra.mxu0 0.0
    %65 = vmatprep.subr.mxu0 0.0
    %66 = vmatpush1.msra.mxu0 0.0
    %67 = vmatprep.subr.mxu0 0.0
    %68 = vmatpush1.msra.mxu0 0.0
    %69 = vmatprep.subr.mxu0 0.0
    %70 = vmatpush1.msra.mxu0 0.0
    %71 = vmatprep.subr.mxu0 0.0
    %72 = vmatpush1.msra.mxu0 0.0
    %73 = vmatprep.subr.mxu0 0.0
    %74 = vmatpush1.msra.mxu0 0.0
    %75 = vmatprep.subr.mxu0 0.0
    %76 = vmatpush1.msra.mxu0 0.0
    %77 = vmatprep.subr.mxu0 0.0
    %78 = vmatpush1.msra.mxu0 0.0
    %79 = vmatprep.subr.mxu0 0.0
    %80 = vmatpush1.msra.mxu0 0.0
    %81 = vmatprep.subr.mxu0 0.0
    %82 = vmatpush1.msra.mxu0 0.0
    %83 = vmatprep.subr.mxu0 0.0
    %84 = vmatpush1.msra.mxu0 0.0
    %85 = vmatprep.subr.mxu0 0.0
    %86 = vmatpush1.msra.mxu0 0.0
    %87 = vmatprep.subr.mxu0 0.0
    %88 = vmatpush1.msra.mxu0 0.0
    %89 = vmatprep.subr.mxu0 0.0
    %90 = vmatpush1.msra.mxu0 0.0
    %91 = vmatprep.subr.mxu0 0.0
    %92 = vmatpush1.msra.mxu0 0.0
    %93 = vmatprep.subr.mxu0 0.0
    %94 = vmatpush1.msra.mxu0 0.0
    %95 = vmatprep.subr.mxu0 0.0
    %96 = vmatpush1.msra.mxu0 0.0
    %97 = vmatprep.subr.mxu0 0.0
    %98 = vmatpush1.msra.mxu0 0.0
    %99 = vmatprep.mubr.f32.mxu0 0.0
    %100 = vmatmul.mubr.f32.gmra.mrb[0].mxu0 %v30
    %v101 = vpop.f32.mrb[0].mxu0
    %v102 = vadd.f32 %v26, %v101
    %v103 = vpop.f32.mrb[0].mxu0
    %104 = vmatprep.mubr.f32.mxu0 0.0
    %105 = vmatmul.mubr.f32.gmra.mrb[0].mxu0 %v33
    %v106 = vpop.f32.mrb[0].mxu0
    %v107 = vadd.f32 %v26, %v106
    %v108 = vpop.f32.mrb[0].mxu0
    %109 = vdwg.mxu0
    %vm110 = vcmask 64512
    %111 = vst.msk [vmem:[#allocation2] sm:$0xff] %vm110, %v102
    %112 = vst.msk [vmem:[#allocation2 + $0x8] sm:$0xff] %vm110, %v107
    // Predicated region
    $region14: #{_decoder_forward.7} parent=1 // pred_check
      _
    $region15: #{_decoder_forward.7} parent=1 // pred_check_branch
      %114 = sbr.rel (0) target = $region17
    $region16: #{_decoder_forward.7} parent=1 // pred_region
      %s116 = ssub.s32 256, 256
      %117 = vsyncadd [#allocation3], %s116
      %s118 = sshll.u32 [#allocation2], 4
      %s119 = int_to_ptr.vmem [resolvable:$true] %s118
      %124 = dma.vmem_to_hbm [thread:$0]  %s119, 256, %s3, [#allocation3], 128, 128, 8
    $region17: #{_decoder_forward.7} parent=1 // pred_fallthru
      _
    // Predicated region
    $region18: #{_decoder_forward.7} parent=1 // pred_check
      _
    $region19: #{_decoder_forward.7} parent=1 // pred_check_branch
      %126 = sbr.rel (0) target = $region21
    $region20: #{_decoder_forward.7} parent=1 // pred_region
      %127 = dma.done [#allocation3], 256
    $region21: #{_decoder_forward.7} parent=1 // pred_fallthru
      _
    %128 = vsyncpa [#allocation3], 1

</llo_original>
